<compile_context>
chip_gen: v7x
topology: tpu7x:2x2x1
jax: 0.10.0
libtpu: 0.0.40
codegen_flags: <defaults>
</compile_context>

<pallas_src>
import functools

import jax
import jax.numpy as jnp
from jax.experimental import pallas as pl
from jax.experimental.pallas import tpu as pltpu


def _round_up(x, m):
    return pl.cdiv(x, m) * m


def _embeddings_kernel(x_ref, gamma_ref, beta_ref, w_ref, b_ref, o_ref, y_ref, *, inv_h):
    """One (row-tile, col-tile) step: LN (cached per row tile) -> MXU projection."""
    # LayerNorm only on the first column tile of each row tile; result cached in y_ref.
    @pl.when(pl.program_id(1) == 0)
    def _():
        x = x_ref[...].astype(jnp.float32)                       # [tm, H_pad]
        # One-pass statistics over the true H (padded lanes are zero, so sums are exact).
        mean = jnp.sum(x, axis=-1, keepdims=True) * inv_h
        mean_sq = jnp.sum(x * x, axis=-1, keepdims=True) * inv_h
        var = jnp.maximum(mean_sq - mean * mean, 0.0)
        xn = (x - mean) * jax.lax.rsqrt(var + 1e-5)
        y = xn * gamma_ref[...].astype(jnp.float32) + beta_ref[...].astype(jnp.float32)
        y_ref[...] = y.astype(jnp.bfloat16)                      # padded lanes -> 0 (gamma/beta=0)

    # Projection: bf16 operands into the MXU, f32 accumulation, then f32 bias.
    out = jnp.dot(y_ref[...], w_ref[...], preferred_element_type=jnp.float32)
    o_ref[...] = (out + b_ref[...].astype(jnp.float32)).astype(o_ref.dtype)


def embeddings_forward(token_ids, pos_ids, params, *, tm=256):
    """JAX wrapper reproducing Embeddings.forward (use_elmo=False)."""
    tok_tbl = params["token_embeds"]          # [vocab, H]
    pos_tbl = params["pos_embeds"]            # [max_len, H]
    gamma = params["ln_gamma"]                # [H]
    beta = params["ln_beta"]                  # [H]
    w = params["proj_w"]                      # [H, HA]   (x @ w == torch Linear with W.T)
    b = params["proj_b"]                      # [HA]

    B, S = token_ids.shape
    H = tok_tbl.shape[1]
    HA = w.shape[1]
    M = B * S

    # TODO(synk): fuse the embedding-table gathers into the kernel (scalar-prefetch ids +
    # manual DMA gather) so the [B*S, H] slab never round-trips through HBM.
    rep = jnp.take(tok_tbl, token_ids, axis=0)                   # [B, S, H]
    pos = jnp.take(pos_tbl, pos_ids, axis=0)                     # [B, S, H]
    x = (rep + pos).reshape(M, H).astype(jnp.bfloat16)           # bf16 I/O (mem-bound op)

    # Adaptive row tile: multiple of 8, never larger than needed for small M.
    tm = min(tm, _round_up(M, 8))
    M_pad = _round_up(M, tm)

    # Lane-dense feature / output widths (multiples of 128).
    H_pad = _round_up(H, 128)
    HA_pad = _round_up(HA, 128)
    tn = next(t for t in (1024, 512, 256, 128) if HA_pad % t == 0)

    if (M_pad, H_pad) != (M, H):
        x = jnp.pad(x, ((0, M_pad - M), (0, H_pad - H)))

    gamma_p = gamma.astype(jnp.float32)
    beta_p = beta.astype(jnp.float32)
    w_p = w.astype(jnp.bfloat16)
    b_p = b.astype(jnp.float32)
    if H_pad != H:
        gamma_p = jnp.pad(gamma_p, ((0, H_pad - H),))
        beta_p = jnp.pad(beta_p, ((0, H_pad - H),))
        w_p = jnp.pad(w_p, ((0, H_pad - H), (0, 0)))
    if HA_pad != HA:
        w_p = jnp.pad(w_p, ((0, 0), (0, HA_pad - HA)))
        b_p = jnp.pad(b_p, ((0, HA_pad - HA),))

    grid = (M_pad // tm, HA_pad // tn)
    kernel = functools.partial(_embeddings_kernel, inv_h=1.0 / float(H))

    out = pl.pallas_call(
        kernel,
        out_shape=jax.ShapeDtypeStruct((M_pad, HA_pad), jnp.float32),
        grid_spec=pltpu.PrefetchScalarGridSpec(
            num_scalar_prefetch=0,
            grid=grid,
            in_specs=[
                pl.BlockSpec((tm, H_pad), lambda i, j: (i, 0)),     # activation rows (bf16)
                pl.BlockSpec((1, H_pad), lambda i, j: (0, 0)),      # LN gamma (f32)
                pl.BlockSpec((1, H_pad), lambda i, j: (0, 0)),      # LN beta  (f32)
                pl.BlockSpec((H_pad, tn), lambda i, j: (0, j)),     # projection weight (bf16)
                pl.BlockSpec((1, tn), lambda i, j: (0, j)),         # projection bias (f32)
            ],
            out_specs=pl.BlockSpec((tm, tn), lambda i, j: (i, j)),
            scratch_shapes=[pltpu.VMEM((tm, H_pad), jnp.bfloat16)], # cached LN result per row tile
        ),
        compiler_params=pltpu.CompilerParams(
            dimension_semantics=("parallel", "arbitrary"),
            vmem_limit_bytes=64 * 1024 * 1024,
        ),
    )(x,
      gamma_p.reshape(1, H_pad),
      beta_p.reshape(1, H_pad),
      w_p,
      b_p.reshape(1, HA_pad))

    return out[:M, :HA].reshape(B, S, HA)


def init_params(key, vocab_size, max_len, h_size, h_attn_size):
    k1, k2, k3, k4 = jax.random.split(key, 4)
    tok = jax.random.normal(k1, (vocab_size, h_size), jnp.float32) * 0.02
    tok = tok.at[0].set(0.0)                                     # padding_idx=0
    pos = jax.random.normal(k2, (max_len, h_size), jnp.float32) * 0.02
    gamma = jnp.ones((h_size,), jnp.float32)
    beta = jnp.zeros((h_size,), jnp.float32)
    w = jax.random.normal(k3, (h_size, h_attn_size), jnp.float32) * (1.0 / h_size ** 0.5)
    b = jax.random.normal(k4, (h_attn_size,), jnp.float32) * 0.01
    return {"token_embeds": tok, "pos_embeds": pos,
            "ln_gamma": gamma, "ln_beta": beta,
            "proj_w": w, "proj_b": b}


def reference_forward_f32(token_ids, pos_ids, params):
    """Pure f32 reference matching the PyTorch module."""
    rep = jnp.take(params["token_embeds"], token_ids, axis=0)
    pos = jnp.take(params["pos_embeds"], pos_ids, axis=0)
    x = rep + pos
    mean = jnp.mean(x, axis=-1, keepdims=True)
    var = jnp.mean((x - mean) ** 2, axis=-1, keepdims=True)
    xn = (x - mean) * jax.lax.rsqrt(var + 1e-5)
    y = xn * params["ln_gamma"] + params["ln_beta"]
    return y @ params["proj_w"] + params["proj_b"]


def reference_forward_bf16(token_ids, pos_ids, params):
    """Reference mirroring the kernel's bf16 cast points (tight tolerance check)."""
    rep = jnp.take(params["token_embeds"], token_ids, axis=0)
    pos = jnp.take(params["pos_embeds"], pos_ids, axis=0)
    x = (rep + pos).astype(jnp.bfloat16).astype(jnp.float32)
    mean = jnp.mean(x, axis=-1, keepdims=True)
    mean_sq = jnp.mean(x * x, axis=-1, keepdims=True)
    var = jnp.maximum(mean_sq - mean * mean, 0.0)
    xn = (x - mean) * jax.lax.rsqrt(var + 1e-5)
    y = xn * params["ln_gamma"] + params["ln_beta"]
    out = jnp.einsum("bsh,ha->bsa", y.astype(jnp.bfloat16),
                     params["proj_w"].astype(jnp.bfloat16),
                     preferred_element_type=jnp.float32)
    return out + params["proj_b"]


if __name__ == "__main__":
    # Small, module-consistent shapes: use_elmo=False.
    vocab_size, max_len, h_size, h_attn_size = 50, 16, 32, 64
    B, S = 2, 8

    key = jax.random.PRNGKey(0)
    kp, ki = jax.random.split(key)
    params = init_params(kp, vocab_size, max_len, h_size, h_attn_size)

    token_ids = jax.random.randint(ki, (B, S), 0, vocab_size, dtype=jnp.int32)
    pos_ids = jnp.broadcast_to(jnp.arange(S, dtype=jnp.int32), (B, S))

    out = embeddings_forward(token_ids, pos_ids, params)
    out = jax.block_until_ready(out)
    assert out.shape == (B, S, h_attn_size)

    # Tight check against a reference that uses the same bf16 cast points.
    ref_bf16 = reference_forward_bf16(token_ids, pos_ids, params)
    assert jnp.allclose(out, ref_bf16, atol=5e-3, rtol=5e-3)

    # Looser check against the pure-f32 PyTorch-equivalent math (bf16 MXU operands).
    ref_f32 = reference_forward_f32(token_ids, pos_ids, params)
    assert jnp.allclose(out, ref_f32, atol=1e-1, rtol=1e-1)

    print("KERNEL_OK")
</pallas_src>

<mosaic_0001>
module attributes {stable_mosaic.version = 11 : i64} {
  func.func @_embeddings_kernel(%arg0: i32, %arg1: i32, %arg2: memref<16x128xbf16, #tpu.memory_space<vmem>>, %arg3: memref<1x128xf32, #tpu.memory_space<vmem>>, %arg4: memref<1x128xf32, #tpu.memory_space<vmem>>, %arg5: memref<128x128xbf16, #tpu.memory_space<vmem>>, %arg6: memref<1x128xf32, #tpu.memory_space<vmem>>, %arg7: memref<16x128xf32, #tpu.memory_space<vmem>>, %arg8: memref<16x128xbf16, #tpu.memory_space<vmem>>) attributes {dimension_semantics = [#tpu.dimension_semantics<parallel>, #tpu.dimension_semantics<arbitrary>], iteration_bounds = array<i64: 1, 1>, scalar_prefetch = 0 : i64, scratch_operands = 1 : i64, tpu.core_type = #tpu.core_type<tc>, window_params = [{transform_indices = @transform_0, window_bounds = array<i64: 16, 128>}, {pipeline_mode = #tpu.pipeline_mode<synchronous>, transform_indices = @transform_1, window_bounds = array<i64: 1, 128>}, {pipeline_mode = #tpu.pipeline_mode<synchronous>, transform_indices = @transform_2, window_bounds = array<i64: 1, 128>}, {transform_indices = @transform_3, window_bounds = array<i64: 128, 128>}, {transform_indices = @transform_4, window_bounds = array<i64: 1, 128>}, {transform_indices = @transform_5, window_bounds = array<i64: 16, 128>}]} {
    %c0_i32 = arith.constant 0 : i32
    %0 = arith.cmpi eq, %arg1, %c0_i32 : i32
    %1 = arith.extui %0 : i1 to i32
    %c0_i32_0 = arith.constant 0 : i32
    %2 = arith.cmpi ne, %1, %c0_i32_0 : i32
    scf.if %2 {
      %c0_8 = arith.constant 0 : index
      %c0_9 = arith.constant 0 : index
      %10 = vector.load %arg2[%c0_8, %c0_9] : memref<16x128xbf16, #tpu.memory_space<vmem>>, vector<16x128xbf16>
      %11 = arith.extf %10 : vector<16x128xbf16> to vector<16x128xf32>
      %cst_10 = arith.constant dense<0.000000e+00> : vector<16xf32>
      %12 = vector.multi_reduction <add>, %11, %cst_10 [1] : vector<16x128xf32> to vector<16xf32>
      %13 = vector.shape_cast %12 : vector<16xf32> to vector<16x1xf32>
      %cst_11 = arith.constant 3.125000e-02 : f32
      %14 = vector.broadcast %cst_11 : f32 to vector<16x1xf32>
      %15 = arith.mulf %13, %14 : vector<16x1xf32>
      %16 = arith.mulf %11, %11 : vector<16x128xf32>
      %cst_12 = arith.constant dense<0.000000e+00> : vector<16xf32>
      %17 = vector.multi_reduction <add>, %16, %cst_12 [1] : vector<16x128xf32> to vector<16xf32>
      %18 = vector.shape_cast %17 : vector<16xf32> to vector<16x1xf32>
      %cst_13 = arith.constant 3.125000e-02 : f32
      %19 = vector.broadcast %cst_13 : f32 to vector<16x1xf32>
      %20 = arith.mulf %18, %19 : vector<16x1xf32>
      %21 = arith.mulf %15, %15 : vector<16x1xf32>
      %22 = arith.subf %20, %21 : vector<16x1xf32>
      %cst_14 = arith.constant 0.000000e+00 : f32
      %23 = vector.broadcast %cst_14 : f32 to vector<16x1xf32>
      %24 = arith.maximumf %22, %23 : vector<16x1xf32>
      %25 = vector.broadcast %15 : vector<16x1xf32> to vector<16x128xf32>
      %26 = arith.subf %11, %25 : vector<16x128xf32>
      %cst_15 = arith.constant 9.99999974E-6 : f32
      %27 = vector.broadcast %cst_15 : f32 to vector<16x1xf32>
      %28 = arith.addf %24, %27 : vector<16x1xf32>
      %29 = math.rsqrt %28 : vector<16x1xf32>
      %30 = vector.broadcast %29 : vector<16x1xf32> to vector<16x128xf32>
      %31 = arith.mulf %26, %30 : vector<16x128xf32>
      %c0_16 = arith.constant 0 : index
      %c0_17 = arith.constant 0 : index
      %32 = vector.load %arg3[%c0_16, %c0_17] : memref<1x128xf32, #tpu.memory_space<vmem>>, vector<1x128xf32>
      %33 = vector.broadcast %32 : vector<1x128xf32> to vector<16x128xf32>
      %34 = arith.mulf %31, %33 : vector<16x128xf32>
      %c0_18 = arith.constant 0 : index
      %c0_19 = arith.constant 0 : index
      %35 = vector.load %arg4[%c0_18, %c0_19] : memref<1x128xf32, #tpu.memory_space<vmem>>, vector<1x128xf32>
      %36 = vector.broadcast %35 : vector<1x128xf32> to vector<16x128xf32>
      %37 = arith.addf %34, %36 : vector<16x128xf32>
      %38 = arith.truncf %37 : vector<16x128xf32> to vector<16x128xbf16>
      %c0_20 = arith.constant 0 : index
      %c0_21 = arith.constant 0 : index
      %39 = vector.load %arg8[%c0_20, %c0_21] : memref<16x128xbf16, #tpu.memory_space<vmem>>, vector<16x128xbf16>
      tpu.vector_store %arg8[%c0_20, %c0_21], %38 {strides = array<i32>} : memref<16x128xbf16, #tpu.memory_space<vmem>>, vector<16x128xbf16>,
    } else {
    }
    %c0 = arith.constant 0 : index
    %c0_1 = arith.constant 0 : index
    %3 = vector.load %arg8[%c0, %c0_1] : memref<16x128xbf16, #tpu.memory_space<vmem>>, vector<16x128xbf16>
    %c0_2 = arith.constant 0 : index
    %c0_3 = arith.constant 0 : index
    %4 = vector.load %arg5[%c0_2, %c0_3] : memref<128x128xbf16, #tpu.memory_space<vmem>>, vector<128x128xbf16>
    %cst = arith.constant dense<0.000000e+00> : vector<16x128xf32>
    %5 = tpu.matmul %3, %4, %cst {dimension_numbers = #tpu.dot_dimension_numbers<[1], [0], [0], [1], [0, 0, 1, 1], [], []>} : vector<16x128xbf16>, vector<128x128xbf16>, vector<16x128xf32> -> vector<16x128xf32>
    %c0_4 = arith.constant 0 : index
    %c0_5 = arith.constant 0 : index
    %6 = vector.load %arg6[%c0_4, %c0_5] : memref<1x128xf32, #tpu.memory_space<vmem>>, vector<1x128xf32>
    %7 = vector.broadcast %6 : vector<1x128xf32> to vector<16x128xf32>
    %8 = arith.addf %5, %7 : vector<16x128xf32>
    %c0_6 = arith.constant 0 : index
    %c0_7 = arith.constant 0 : index
    %9 = vector.load %arg7[%c0_6, %c0_7] : memref<16x128xf32, #tpu.memory_space<vmem>>, vector<16x128xf32>
    tpu.vector_store %arg7[%c0_6, %c0_7], %8 {strides = array<i32>} : memref<16x128xf32, #tpu.memory_space<vmem>>, vector<16x128xf32>,
    return
  }
  func.func @transform_0(%arg0: i32, %arg1: i32) -> (i32, i32) {
    %c0_i32 = arith.constant 0 : i32
    %c0_i32_0 = arith.constant 0 : i32
    return %arg0, %c0_i32 : i32, i32
  }
  func.func @transform_1(%arg0: i32, %arg1: i32) -> (i32, i32) {
    %c0_i32 = arith.constant 0 : i32
    %c0_i32_0 = arith.constant 0 : i32
    %c0_i32_1 = arith.constant 0 : i32
    return %c0_i32, %c0_i32_0 : i32, i32
  }
  func.func @transform_2(%arg0: i32, %arg1: i32) -> (i32, i32) {
    %c0_i32 = arith.constant 0 : i32
    %c0_i32_0 = arith.constant 0 : i32
    %c0_i32_1 = arith.constant 0 : i32
    return %c0_i32, %c0_i32_0 : i32, i32
  }
  func.func @transform_3(%arg0: i32, %arg1: i32) -> (i32, i32) {
    %c0_i32 = arith.constant 0 : i32
    %c0_i32_0 = arith.constant 0 : i32
    return %c0_i32, %arg1 : i32, i32
  }
  func.func @transform_4(%arg0: i32, %arg1: i32) -> (i32, i32) {
    %c0_i32 = arith.constant 0 : i32
    %c0_i32_0 = arith.constant 0 : i32
    return %c0_i32, %arg1 : i32, i32
  }
  func.func @transform_5(%arg0: i32, %arg1: i32) -> (i32, i32) {
    %c0_i32 = arith.constant 0 : i32
    return %arg0, %arg1 : i32, i32
  }
}

</mosaic_0001>

<llo_original>
// kernel: tpu_custom_call.1
$region0: #{tpu_custom_call.1}
  #allocation0 [shape = 'u32[]', space=smem, size = 0x4, offset = 0x4, fixed_abs, tag = 'smem constant byte address 0x4 - core index']
  #allocation1 [shape = 'u32[144,128]{1,0:T(1,128)}', space=vmem, size = 0x12000, scoped, tag = 'internal scratch']
  #allocation2 [shape = 'bf16[16,128]{1,0:T(16,128)(2,1)}', space=vmem, size = 0x1000, scoped, tag = 'scratch operand']
  %s0 = inlined_call_operand.hbm [shape: bf16[16,128], index: 0, kind: input, shape index: {}]
  %s1 = inlined_call_operand.hbm [shape: f32[1,128], index: 1, kind: input, shape index: {}]
  %s2 = inlined_call_operand.hbm [shape: f32[1,128], index: 2, kind: input, shape index: {}]
  %s3 = inlined_call_operand.hbm [shape: bf16[128,128], index: 3, kind: input, shape index: {}]
  %s4 = inlined_call_operand.hbm [shape: f32[1,128], index: 4, kind: input, shape index: {}]
  %s5 = inlined_call_operand.hbm [shape: f32[16,128], index: 5, kind: output, shape index: {}]
  %s6 = sld [smem:[#allocation0]]
  $region54: #{tpu_custom_call.1} parent=0
    _
  %s8 = ssub.s32 1, %s6
  %s9 = scalar_select 0, %s8, %s6
  $region1: #{tpu_custom_call.1} parent=0
    #allocation3 [shape = 'u8[4096]{0}', space=vmem, size = 0x1000, scoped, tag = 'input window, operand 0, single buffered']
    #allocation4 [shape = 's32[1]{0}', space=sflag, size = 0x4, scoped, tag = 'scoped memory for tpu_custom_call.1']
    #allocation5 [shape = 's32[1]{0}', space=sflag, size = 0x4, scoped, tag = 'scoped memory for tpu_custom_call.1']
    #allocation6 [shape = 'u8[512]{0}', space=vmem, size = 0x400, scoped, tag = 'input window, operand 1, single buffered']
    #allocation7 [shape = 's32[1]{0}', space=sflag, size = 0x4, scoped, tag = 'scoped memory for tpu_custom_call.1']
    #allocation8 [shape = 'u8[512]{0}', space=vmem, size = 0x400, scoped, tag = 'input window, operand 2, single buffered']
    #allocation9 [shape = 'u8[32768]{0}', space=vmem, size = 0x8000, scoped, tag = 'input window, operand 3, single buffered']
    #allocation10 [shape = 's32[1]{0}', space=sflag, size = 0x4, scoped, tag = 'scoped memory for tpu_custom_call.1']
    #allocation11 [shape = 'u8[512]{0}', space=vmem, size = 0x400, scoped, tag = 'input window, operand 4, single buffered']
    #allocation12 [shape = 'u8[8192]{0}', space=vmem, size = 0x2000, scoped, tag = 'output window, operand 0, single buffered']
    %10 = vsyncpa [#allocation4], 0
    %11 = vsyncpa [#allocation7], 0
    %12 = vsyncpa [#allocation10], 0
    %13 = vsyncpa [#allocation5], 0
    // Predicated region
    $region2: #{tpu_custom_call.1} parent=1 // pred_check
      _
    $region3: #{tpu_custom_call.1} parent=1 // pred_check_branch
      %15 = sbr.rel (0) target = $region5
    $region4: #{tpu_custom_call.1} parent=1 // pred_region
      %s17 = ssub.s32 128, 128
      %18 = vsyncadd [#allocation4], %s17
      %s19 = sshll.u32 [#allocation3], 4
      %s20 = int_to_ptr.vmem [resolvable:$true] %s19
      %25 = dma.hbm_to_vmem [thread:$0]  %s0, 128, %s20, [#allocation4], 64, 64, 4
    $region5: #{tpu_custom_call.1} parent=1 // pred_fallthru
      _
    // Predicated region
    $region6: #{tpu_custom_call.1} parent=1 // pred_check
      _
    $region7: #{tpu_custom_call.1} parent=1 // pred_check_branch
      %27 = sbr.rel (0) target = $region9
    $region8: #{tpu_custom_call.1} parent=1 // pred_region
      %s29 = ssub.s32 16, 16
      %30 = vsyncadd [#allocation7], %s29
      %s32 = sshll.u32 [#allocation6], 4
      %s33 = int_to_ptr.vmem [resolvable:$true] %s32
      %35 = dma.hbm_to_vmem [thread:$0]  %s1, 16, %s33, [#allocation7]
    $region9: #{tpu_custom_call.1} parent=1 // pred_fallthru
      _
    // Predicated region
    $region10: #{tpu_custom_call.1} parent=1 // pred_check
      _
    $region11: #{tpu_custom_call.1} parent=1 // pred_check_branch
      %37 = sbr.rel (0) target = $region13
    $region12: #{tpu_custom_call.1} parent=1 // pred_region
      %s39 = ssub.s32 16, 16
      %40 = vsyncadd [#allocation7], %s39
      %s42 = sshll.u32 [#allocation8], 4
      %s43 = int_to_ptr.vmem [resolvable:$true] %s42
      %45 = dma.hbm_to_vmem [thread:$0]  %s2, 16, %s43, [#allocation7]
    $region13: #{tpu_custom_call.1} parent=1 // pred_fallthru
      _
    // Predicated region
    $region14: #{tpu_custom_call.1} parent=1 // pred_check
      _
    $region15: #{tpu_custom_call.1} parent=1 // pred_check_branch
      %47 = sbr.rel (0) target = $region17
    $region16: #{tpu_custom_call.1} parent=1 // pred_region
      %s49 = ssub.s32 1024, 1024
      %50 = vsyncadd [#allocation10], %s49
      %s51 = sshll.u32 [#allocation9], 4
      %s52 = int_to_ptr.vmem [resolvable:$true] %s51
      %57 = dma.hbm_to_vmem [thread:$0]  %s3, 1024, %s52, [#allocation10], 64, 64, 4
    $region17: #{tpu_custom_call.1} parent=1 // pred_fallthru
      _
    // Predicated region
    $region18: #{tpu_custom_call.1} parent=1 // pred_check
      _
    $region19: #{tpu_custom_call.1} parent=1 // pred_check_branch
      %59 = sbr.rel (0) target = $region21
    $region20: #{tpu_custom_call.1} parent=1 // pred_region
      %s61 = ssub.s32 16, 16
      %62 = vsyncadd [#allocation10], %s61
      %s64 = sshll.u32 [#allocation11], 4
      %s65 = int_to_ptr.vmem [resolvable:$true] %s64
      %67 = dma.hbm_to_vmem [thread:$0]  %s4, 16, %s65, [#allocation10]
    $region21: #{tpu_custom_call.1} parent=1 // pred_fallthru
      _
    // Predicated region
    $region22: #{tpu_custom_call.1} parent=1 // pred_check
      _
    $region23: #{tpu_custom_call.1} parent=1 // pred_check_branch
      %69 = sbr.rel (0) target = $region25
    $region24: #{tpu_custom_call.1} parent=1 // pred_region
      %70 = dma.done [#allocation4], 128
    $region25: #{tpu_custom_call.1} parent=1 // pred_fallthru
      _
    // Predicated region
    $region26: #{tpu_custom_call.1} parent=1 // pred_check
      _
    $region27: #{tpu_custom_call.1} parent=1 // pred_check_branch
      %72 = sbr.rel (0) target = $region29
    $region28: #{tpu_custom_call.1} parent=1 // pred_region
      %73 = dma.done [#allocation7], 16
    $region29: #{tpu_custom_call.1} parent=1 // pred_fallthru
      _
    // Predicated region
    $region30: #{tpu_custom_call.1} parent=1 // pred_check
      _
    $region31: #{tpu_custom_call.1} parent=1 // pred_check_branch
      %75 = sbr.rel (0) target = $region33
    $region32: #{tpu_custom_call.1} parent=1 // pred_region
      %76 = dma.done [#allocation7], 16
    $region33: #{tpu_custom_call.1} parent=1 // pred_fallthru
      _
    // Predicated region
    $region34: #{tpu_custom_call.1} parent=1 // pred_check
      _
    $region35: #{tpu_custom_call.1} parent=1 // pred_check_branch
      %78 = sbr.rel (0) target = $region37
    $region36: #{tpu_custom_call.1} parent=1 // pred_region
      %79 = dma.done [#allocation10], 1024
    $region37: #{tpu_custom_call.1} parent=1 // pred_fallthru
      _
    // Predicated region
    $region38: #{tpu_custom_call.1} parent=1 // pred_check
      _
    $region39: #{tpu_custom_call.1} parent=1 // pred_check_branch
      %81 = sbr.rel (0) target = $region41
    $region40: #{tpu_custom_call.1} parent=1 // pred_region
      %82 = dma.done [#allocation10], 16
    $region41: #{tpu_custom_call.1} parent=1 // pred_fallthru
      _
    %p84 = scmp.eq.s32.totalorder 0, 0
    // Predicated region
    $region42: #{tpu_custom_call.1} parent=1 // pred_check
      %p85 = pneg %p84
    $region43: #{tpu_custom_call.1} parent=1 // pred_check_branch
      %87 = sbr.rel (%p85) target = $region45
    $region44: #{tpu_custom_call.1} parent=1 // pred_region
      %v88 = vld [vmem:[#allocation3] sm:$0xf]
      %v89 = vld [vmem:[#allocation3 + $0x4] sm:$0xf]
      %v90 = vunpack.c.l.bf16 %v88
      %v91 = vunpack.c.l.bf16 %v89
      %92 = vadd.xlane.f32.xlu0 %v90
      %v93 = vpop.xlane.xlu0 %92
      %94 = vadd.xlane.f32.xlu0 %v91
      %v95 = vpop.xlane.xlu0 %94
      %v96 = vmul.f32 %v93, 0.03125
      %v97 = vmul.f32 %v95, 0.03125
      %v98 = vmul.f32 %v90, %v90
      %v99 = vmul.f32 %v91, %v91
      %100 = vadd.xlane.f32.xlu0 %v98
      %v101 = vpop.xlane.xlu0 %100
      %102 = vadd.xlane.f32.xlu0 %v99
      %v103 = vpop.xlane.xlu0 %102
      %v104 = vmul.f32 %v101, 0.03125
      %v105 = vmul.f32 %v103, 0.03125
      %v106 = vmul.f32 %v96, %v96
      %v107 = vmul.f32 %v97, %v97
      %v108 = vsub.f32 %v104, %v106
      %v109 = vsub.f32 %v105, %v107
      %v110 = vmax.f32 %v108, 0.0
      %v111 = vmax.f32 %v109, 0.0
      %v112 = vsub.f32 %v90, %v96
      %v113 = vsub.f32 %v91, %v97
      %v114 = vadd.f32 %v110, 1e-05
      %v115 = vadd.f32 %v111, 1e-05
      %v116 = vrsqrt.pop %v114
      %v117 = vrsqrt.pop %v115
      %v118 = vmul.f32 %v112, %v116
      %v119 = vmul.f32 %v113, %v117
      %v120 = vld [vmem:[#allocation6] sm:$0x1]
      %v122 = vlaneseq
      %v123 = vshrl.u32 %v122, 7
      %v124 = vsub.s32 0, %v123
      %v125 = vrot.slane %v120, %v124
      %v127 = vmul.f32 %v118, %v125
      %v128 = vmul.f32 %v119, %v125
      %v129 = vld [vmem:[#allocation8] sm:$0x1]
      %v131 = vlaneseq
      %v132 = vshrl.u32 %v131, 7
      %v133 = vsub.s32 0, %v132
      %v134 = vrot.slane %v129, %v133
      %v136 = vadd.f32 %v127, %v134
      %v137 = vadd.f32 %v128, %v134
      %v138 = vpack.c.bf16 %v137, %v136
      %139 = vst [vmem:[#allocation2] sm:$0xff] %v138
    $region45: #{tpu_custom_call.1} parent=1 // pred_fallthru
      _
    %v140 = vld [vmem:[#allocation2] sm:$0xff]
    %v141 = vld [vmem:[#allocation9] sm:$0xf]
    %v142 = vld [vmem:[#allocation9 + $0x4] sm:$0xf]
    %v143 = vld [vmem:[#allocation9 + $0x8] sm:$0xf]
    %v144 = vld [vmem:[#allocation9 + $0xc] sm:$0xf]
    %v145 = vld [vmem:[#allocation9 + $0x10] sm:$0xf]
    %v146 = vld [vmem:[#allocation9 + $0x14] sm:$0xf]
    %v147 = vld [vmem:[#allocation9 + $0x18] sm:$0xf]
    %v148 = vld [vmem:[#allocation9 + $0x1c] sm:$0xf]
    %v149 = vld [vmem:[#allocation9 + $0x20] sm:$0xf]
    %v150 = vld [vmem:[#allocation9 + $0x24] sm:$0xf]
    %v151 = vld [vmem:[#allocation9 + $0x28] sm:$0xf]
    %v152 = vld [vmem:[#allocation9 + $0x2c] sm:$0xf]
    %v153 = vld [vmem:[#allocation9 + $0x30] sm:$0xf]
    %v154 = vld [vmem:[#allocation9 + $0x34] sm:$0xf]
    %v155 = vld [vmem:[#allocation9 + $0x38] sm:$0xf]
    %v156 = vld [vmem:[#allocation9 + $0x3c] sm:$0xf]
    %v157 = vld [vmem:[#allocation11] sm:$0x1]
    %v159 = vlaneseq
    %v160 = vshrl.u32 %v159, 7
    %v161 = vsub.s32 0, %v160
    %v162 = vrot.slane %v157, %v161
    %v180 = vunpack.c.l.b16 %v141
    %v181 = vunpack.c.l.b16 %v142
    %v182 = vunpack.c.l.b16 %v143
    %v183 = vunpack.c.l.b16 %v144
    %v184 = vunpack.c.l.b16 %v145
    %v185 = vunpack.c.l.b16 %v146
    %v186 = vunpack.c.l.b16 %v147
    %v187 = vunpack.c.l.b16 %v148
    %v188 = vunpack.c.l.b16 %v149
    %v189 = vunpack.c.l.b16 %v150
    %v190 = vunpack.c.l.b16 %v151
    %v191 = vunpack.c.l.b16 %v152
    %v192 = vunpack.c.l.b16 %v153
    %v193 = vunpack.c.l.b16 %v154
    %v194 = vunpack.c.l.b16 %v155
    %v195 = vunpack.c.l.b16 %v156
    %v196 = vpack.c.b16 %v181, %v180
    %v197 = vpack.c.b16 %v183, %v182
    %v198 = vpack.c.b16 %v185, %v184
    %v199 = vpack.c.b16 %v187, %v186
    %v200 = vpack.c.b16 %v189, %v188
    %v201 = vpack.c.b16 %v191, %v190
    %v202 = vpack.c.b16 %v193, %v192
    %v203 = vpack.c.b16 %v195, %v194
    %212 = vmatprep.subr.bf16.mxu0 0
    %213 = vmatpush1.bf16.msra.mxu0 %v196
    %214 = vmatprep.subr.bf16.mxu0 0
    %215 = vmatpush1.bf16.msra.mxu0 %v197
    %216 = vmatprep.subr.bf16.mxu0 0
    %217 = vmatpush1.bf16.msra.mxu0 %v198
    %218 = vmatprep.subr.bf16.mxu0 0
    %219 = vmatpush1.bf16.msra.mxu0 %v199
    %220 = vmatprep.subr.bf16.mxu0 0
    %221 = vmatpush1.bf16.msra.mxu0 %v200
    %222 = vmatprep.subr.bf16.mxu0 0
    %223 = vmatpush1.bf16.msra.mxu0 %v201
    %224 = vmatprep.subr.bf16.mxu0 0
    %225 = vmatpush1.bf16.msra.mxu0 %v202
    %226 = vmatprep.subr.bf16.mxu0 0
    %227 = vmatpush1.bf16.msra.mxu0 %v203
    %228 = vmatprep.subr.bf16.mxu0 0
    %229 = vmatpush1.bf16.msra.mxu0 0
    %230 = vmatprep.subr.bf16.mxu0 0
    %231 = vmatpush1.bf16.msra.mxu0 0
    %232 = vmatprep.subr.bf16.mxu0 0
    %233 = vmatpush1.bf16.msra.mxu0 0
    %234 = vmatprep.subr.bf16.mxu0 0
    %235 = vmatpush1.bf16.msra.mxu0 0
    %236 = vmatprep.subr.bf16.mxu0 0
    %237 = vmatpush1.bf16.msra.mxu0 0
    %238 = vmatprep.subr.bf16.mxu0 0
    %239 = vmatpush1.bf16.msra.mxu0 0
    %240 = vmatprep.subr.bf16.mxu0 0
    %241 = vmatpush1.bf16.msra.mxu0 0
    %242 = vmatprep.subr.bf16.mxu0 0
    %243 = vmatpush1.bf16.msra.mxu0 0
    %244 = vmatprep.mubr.bf16.mxu0 0
    %245 = vmatmul.mubr.bf16.gmra.mrb[0].mxu0 %v140
    %v246 = vpop.f32.mrb[0].mxu0
    %v247 = vadd.f32 %v162, %v246
    %v248 = vpop.f32.mrb[0].mxu0
    %v249 = vpop.f32.mrb[0].mxu0
    %v250 = vadd.f32 %v162, %v249
    %v251 = vpop.f32.mrb[0].mxu0
    %252 = vdwg.mxu0
    %253 = vst [vmem:[#allocation12] sm:$0xff] %v247
    %254 = vst [vmem:[#allocation12 + $0x8] sm:$0xff] %v250
    // Predicated region
    $region46: #{tpu_custom_call.1} parent=1 // pred_check
      _
    $region47: #{tpu_custom_call.1} parent=1 // pred_check_branch
      %256 = sbr.rel (0) target = $region49
    $region48: #{tpu_custom_call.1} parent=1 // pred_region
      %s258 = ssub.s32 256, 256
      %259 = vsyncadd [#allocation5], %s258
      %s260 = sshll.u32 [#allocation12], 4
      %s261 = int_to_ptr.vmem [resolvable:$true] %s260
      %266 = dma.vmem_to_hbm [thread:$0]  %s261, 256, %s5, [#allocation5], 128, 128, 8
    $region49: #{tpu_custom_call.1} parent=1 // pred_fallthru
      _
    // Predicated region
    $region50: #{tpu_custom_call.1} parent=1 // pred_check
      _
    $region51: #{tpu_custom_call.1} parent=1 // pred_check_branch
      %268 = sbr.rel (0) target = $region53
    $region52: #{tpu_custom_call.1} parent=1 // pred_region
      %269 = dma.done [#allocation5], 256
    $region53: #{tpu_custom_call.1} parent=1 // pred_fallthru
      _
    %270 = vsyncpa [#allocation4], 1
    %271 = vsyncpa [#allocation7], 1
    %272 = vsyncpa [#allocation10], 1
    %273 = vsyncpa [#allocation5], 1

</llo_original>
